<compile_context>
chip_gen: v5e
topology: v5e:2x2
jax: 0.10.0
libtpu: 0.0.40
codegen_flags: <defaults>
</compile_context>

<pallas_src>
import functools

import jax
import jax.numpy as jnp
from jax.experimental import pallas as pl
from jax.experimental.pallas import tpu as pltpu


def _round_up(x, m):
    return (x + m - 1) // m * m


def _brl_kernel(preds_ref, gts_ref, mask_ref, out_ref, sum_acc, cnt_acc,
                *, seq_len, tile_t):
    t_step = pl.program_id(1)

    @pl.when(t_step == 0)
    def _init():
        sum_acc[...] = jnp.zeros_like(sum_acc)
        cnt_acc[...] = jnp.zeros_like(cnt_acc)

    x = preds_ref[...].astype(jnp.float32)   # logits (native dtype in HBM)
    z = gts_ref[...].astype(jnp.float32)     # binary targets (native dtype in HBM)
    m = mask_ref[...]                        # bool, 1 B/elem in HBM

    # Ragged-T tail: columns past the true sequence length read out-of-bounds
    # garbage; drop them with a validity mask (a handful of free VPU ops).
    # Ragged-N tail rows only pollute output rows whose writes Pallas drops,
    # so they need no extra masking.
    col = jax.lax.broadcasted_iota(jnp.int32, x.shape, 1) + t_step * tile_t
    sel = jnp.logical_and(m, col < seq_len)

    # Numerically stable BCE-with-logits, elementwise (VPU + EUP; both slots
    # have slack under the DMA on v5e/v6e).
    # TODO(synk): if a v7x bundle dump shows the EUP slot saturating, run the
    # exp/log1p leg in bf16 (bf16-capable EUP) and keep accumulation in f32.
    bce = jnp.maximum(x, 0.0) - x * z + jnp.log1p(jnp.exp(-jnp.abs(x)))

    sum_acc[...] += jnp.sum(jnp.where(sel, bce, 0.0), axis=-1, keepdims=True)
    cnt_acc[...] += jnp.sum(sel.astype(jnp.float32), axis=-1, keepdims=True)

    @pl.when(t_step == pl.num_programs(1) - 1)
    def _finalize():
        # Mean over the selected elements of each sample.  A sample whose mask
        # is entirely False yields 0/0 = NaN, exactly like PyTorch's mean over
        # an empty selection.
        out_ref[...] = sum_acc[...] / cnt_acc[...]


def boundary_regression_loss(preds, gts, masks, *, tile_n=128, tile_t=4096):
    """preds: (N,1,T) float, gts: (N,1,T) float/bf16 {0,1}, masks: (N,1,T) bool -> f32 scalar."""
    N, C, T = preds.shape
    assert C == 1 and gts.shape == preds.shape and masks.shape == preds.shape

    # Native dtypes straight into the kernel: no wrapper casts / pads (each one
    # would be an extra full HBM read+write pass).  Callers may pass bf16/int8
    # {0,1} targets to halve the gts stream — they are upcast in-register only.
    p = preds.reshape(N, T)
    g = gts.reshape(N, T)
    m = masks.reshape(N, T)          # native 1-byte bool

    tn = min(_round_up(tile_n, 8), _round_up(N, 8))
    # Keep >= 2 entries on the parallel N axis when possible so both v7x
    # TensorCores get work even for small batches.
    if N > 8 and pl.cdiv(N, tn) < 2:
        tn = _round_up(pl.cdiv(N, 2), 8)
    tt = min(_round_up(tile_t, 128), _round_up(T, 128))

    grid = (pl.cdiv(N, tn), pl.cdiv(T, tt))

    kernel = functools.partial(_brl_kernel, seq_len=T, tile_t=tt)

    # Per-step traffic at defaults: 128*4096*(4+4+1) B ~= 4.5 MiB, ~9 MiB
    # double-buffered plus a few MiB of f32 temporaries; 32 MiB scoped VMEM
    # covers that on every generation (raises v5e's 16 MiB default, matches
    # v6e/v7x defaults, stays under v7x's 64 MiB physical VMEM).
    per_sample = pl.pallas_call(
        kernel,
        out_shape=jax.ShapeDtypeStruct((N, 1), jnp.float32),
        grid=grid,
        in_specs=[
            pl.BlockSpec((tn, tt), lambda i, j: (i, j)),
            pl.BlockSpec((tn, tt), lambda i, j: (i, j)),
            pl.BlockSpec((tn, tt), lambda i, j: (i, j)),
        ],
        out_specs=pl.BlockSpec((tn, 1), lambda i, j: (i, 0)),
        scratch_shapes=[
            pltpu.VMEM((tn, 1), jnp.float32),   # masked BCE sum per sample
            pltpu.VMEM((tn, 1), jnp.float32),   # selected-element count per sample
        ],
        compiler_params=pltpu.CompilerParams(
            dimension_semantics=("parallel", "arbitrary"),
            vmem_limit_bytes=32 * 1024 * 1024),
    )(p, g, m)

    # Tiny final combine in plain JAX: average the per-sample means over the batch.
    # NOTE: a sample with an all-False mask contributes NaN (matches PyTorch).
    return jnp.sum(per_sample[:, 0]) / jnp.float32(N)


def _reference(preds, gts, masks):
    # Pure-JAX reference mirroring the PyTorch per-sample loop.
    N = preds.shape[0]
    total = jnp.float32(0.0)
    for n in range(N):
        x = preds[n, 0].astype(jnp.float32)
        z = gts[n, 0].astype(jnp.float32)
        mk = masks[n, 0]
        bce = jnp.maximum(x, 0.0) - x * z + jnp.log1p(jnp.exp(-jnp.abs(x)))
        total = total + jnp.sum(jnp.where(mk, bce, 0.0)) / jnp.sum(mk.astype(jnp.float32))
    return total / N


if __name__ == "__main__":
    key = jax.random.PRNGKey(0)
    k1, k2, k3 = jax.random.split(key, 3)

    # Small shapes, deliberately not (8,128)-aligned so the in-kernel ragged
    # tail handling (no jnp.pad!) is exercised on both grid axes.
    N, T = 10, 300
    preds = jax.random.normal(k1, (N, 1, T), dtype=jnp.float32)            # logits
    gts = (jax.random.uniform(k2, (N, 1, T)) > 0.5).astype(jnp.float32)    # binary targets
    masks = jax.random.uniform(k3, (N, 1, T)) > 0.3                        # bool mask

    # Small tiles here so the demo walks a real multi-step (2 N-tiles x 3
    # T-reduction steps) grid; production defaults are tile_n=128, tile_t=4096.
    loss = boundary_regression_loss(preds, gts, masks, tile_n=8, tile_t=128)
    loss = jax.block_until_ready(loss)

    ref = jax.block_until_ready(_reference(preds, gts, masks))
    assert jnp.allclose(loss, ref, rtol=1e-5, atol=1e-5), (loss, ref)

    print("KERNEL_OK")
</pallas_src>

<mosaic_0001>
module attributes {stable_mosaic.version = 11 : i64} {
  func.func @_brl_kernel(%arg0: i32, %arg1: i32, %arg2: memref<8x128xf32, #tpu.memory_space<vmem>>, %arg3: memref<8x128xf32, #tpu.memory_space<vmem>>, %arg4: memref<8x128xi32, #tpu.memory_space<vmem>>, %arg5: memref<8x1xf32, #tpu.memory_space<vmem>>, %arg6: memref<8x1xf32, #tpu.memory_space<vmem>>, %arg7: memref<8x1xf32, #tpu.memory_space<vmem>>) attributes {dimension_semantics = [#tpu.dimension_semantics<parallel>, #tpu.dimension_semantics<arbitrary>], iteration_bounds = array<i64: 2, 3>, scalar_prefetch = 0 : i64, scratch_operands = 2 : i64, tpu.core_type = #tpu.core_type<tc>, window_params = [{transform_indices = @transform_0, window_bounds = array<i64: 8, 128>}, {transform_indices = @transform_1, window_bounds = array<i64: 8, 128>}, {transform_indices = @transform_2, window_bounds = array<i64: 8, 128>}, {transform_indices = @transform_3, window_bounds = array<i64: 8, 1>}]} {
    %c0_i32 = arith.constant 0 : i32
    %0 = arith.cmpi eq, %arg1, %c0_i32 : i32
    %1 = arith.extui %0 : i1 to i32
    %c0_i32_0 = arith.constant 0 : i32
    %2 = arith.cmpi ne, %1, %c0_i32_0 : i32
    scf.if %2 {
      %cst_20 = arith.constant 0.000000e+00 : f32
      %41 = vector.broadcast %cst_20 : f32 to vector<8x1xf32>
      %c0_21 = arith.constant 0 : index
      %c0_22 = arith.constant 0 : index
      %42 = vector.load %arg6[%c0_21, %c0_22] : memref<8x1xf32, #tpu.memory_space<vmem>>, vector<8x1xf32>
      tpu.vector_store %arg6[%c0_21, %c0_22], %41 {strides = array<i32>} : memref<8x1xf32, #tpu.memory_space<vmem>>, vector<8x1xf32>,
      %cst_23 = arith.constant 0.000000e+00 : f32
      %43 = vector.broadcast %cst_23 : f32 to vector<8x1xf32>
      %c0_24 = arith.constant 0 : index
      %c0_25 = arith.constant 0 : index
      %44 = vector.load %arg7[%c0_24, %c0_25] : memref<8x1xf32, #tpu.memory_space<vmem>>, vector<8x1xf32>
      tpu.vector_store %arg7[%c0_24, %c0_25], %43 {strides = array<i32>} : memref<8x1xf32, #tpu.memory_space<vmem>>, vector<8x1xf32>,
    } else {
    }
    %c0 = arith.constant 0 : index
    %c0_1 = arith.constant 0 : index
    %3 = vector.load %arg2[%c0, %c0_1] : memref<8x128xf32, #tpu.memory_space<vmem>>, vector<8x128xf32>
    %c0_2 = arith.constant 0 : index
    %c0_3 = arith.constant 0 : index
    %4 = vector.load %arg3[%c0_2, %c0_3] : memref<8x128xf32, #tpu.memory_space<vmem>>, vector<8x128xf32>
    %c0_4 = arith.constant 0 : index
    %c0_5 = arith.constant 0 : index
    %5 = vector.load %arg4[%c0_4, %c0_5] : memref<8x128xi32, #tpu.memory_space<vmem>>, vector<8x128xi32>
    %cst = arith.constant dense<0> : vector<8x128xi32>
    %6 = arith.cmpi ne, %5, %cst : vector<8x128xi32>
    %7 = tpu.iota {dimensions = array<i32: 1>} : vector<8x128xi32>
    %c128_i32 = arith.constant 128 : i32
    %8 = arith.muli %arg1, %c128_i32 : i32
    %9 = vector.broadcast %8 : i32 to vector<8x128xi32>
    %10 = arith.addi %7, %9 : vector<8x128xi32>
    %c300_i32 = arith.constant 300 : i32
    %11 = vector.broadcast %c300_i32 : i32 to vector<8x128xi32>
    %12 = arith.cmpi slt, %10, %11 : vector<8x128xi32>
    %13 = arith.andi %6, %12 : vector<8x128xi1>
    %cst_6 = arith.constant 0.000000e+00 : f32
    %14 = vector.broadcast %cst_6 : f32 to vector<8x128xf32>
    %15 = arith.maximumf %3, %14 : vector<8x128xf32>
    %16 = arith.mulf %3, %4 : vector<8x128xf32>
    %17 = arith.subf %15, %16 : vector<8x128xf32>
    %18 = math.absf %3 : vector<8x128xf32>
    %cst_7 = arith.constant 0.000000e+00 : f32
    %19 = vector.broadcast %cst_7 : f32 to vector<8x128xf32>
    %20 = arith.subf %19, %18 : vector<8x128xf32>
    %21 = math.exp %20 : vector<8x128xf32>
    %22 = math.log1p %21 : vector<8x128xf32>
    %23 = arith.addf %17, %22 : vector<8x128xf32>
    %c0_8 = arith.constant 0 : index
    %c0_9 = arith.constant 0 : index
    %24 = vector.load %arg6[%c0_8, %c0_9] : memref<8x1xf32, #tpu.memory_space<vmem>>, vector<8x1xf32>
    %cst_10 = arith.constant 0.000000e+00 : f32
    %25 = vector.broadcast %cst_10 : f32 to vector<8x128xf32>
    %26 = arith.select %13, %23, %25 : vector<8x128xi1>, vector<8x128xf32>
    %cst_11 = arith.constant dense<0.000000e+00> : vector<8xf32>
    %27 = vector.multi_reduction <add>, %26, %cst_11 [1] : vector<8x128xf32> to vector<8xf32>
    %28 = vector.shape_cast %27 : vector<8xf32> to vector<8x1xf32>
    %29 = arith.addf %24, %28 : vector<8x1xf32>
    %c0_12 = arith.constant 0 : index
    %c0_13 = arith.constant 0 : index
    %30 = vector.load %arg6[%c0_12, %c0_13] : memref<8x1xf32, #tpu.memory_space<vmem>>, vector<8x1xf32>
    tpu.vector_store %arg6[%c0_12, %c0_13], %29 {strides = array<i32>} : memref<8x1xf32, #tpu.memory_space<vmem>>, vector<8x1xf32>,
    %c0_14 = arith.constant 0 : index
    %c0_15 = arith.constant 0 : index
    %31 = vector.load %arg7[%c0_14, %c0_15] : memref<8x1xf32, #tpu.memory_space<vmem>>, vector<8x1xf32>
    %32 = arith.extui %13 : vector<8x128xi1> to vector<8x128xi32>
    %33 = arith.sitofp %32 : vector<8x128xi32> to vector<8x128xf32>
    %cst_16 = arith.constant dense<0.000000e+00> : vector<8xf32>
    %34 = vector.multi_reduction <add>, %33, %cst_16 [1] : vector<8x128xf32> to vector<8xf32>
    %35 = vector.shape_cast %34 : vector<8xf32> to vector<8x1xf32>
    %36 = arith.addf %31, %35 : vector<8x1xf32>
    %c0_17 = arith.constant 0 : index
    %c0_18 = arith.constant 0 : index
    %37 = vector.load %arg7[%c0_17, %c0_18] : memref<8x1xf32, #tpu.memory_space<vmem>>, vector<8x1xf32>
    tpu.vector_store %arg7[%c0_17, %c0_18], %36 {strides = array<i32>} : memref<8x1xf32, #tpu.memory_space<vmem>>, vector<8x1xf32>,
    %c2_i32 = arith.constant 2 : i32
    %38 = arith.cmpi eq, %arg1, %c2_i32 : i32
    %39 = arith.extui %38 : i1 to i32
    %c0_i32_19 = arith.constant 0 : i32
    %40 = arith.cmpi ne, %39, %c0_i32_19 : i32
    scf.if %40 {
      %c0_20 = arith.constant 0 : index
      %c0_21 = arith.constant 0 : index
      %41 = vector.load %arg6[%c0_20, %c0_21] : memref<8x1xf32, #tpu.memory_space<vmem>>, vector<8x1xf32>
      %c0_22 = arith.constant 0 : index
      %c0_23 = arith.constant 0 : index
      %42 = vector.load %arg7[%c0_22, %c0_23] : memref<8x1xf32, #tpu.memory_space<vmem>>, vector<8x1xf32>
      %43 = arith.divf %41, %42 : vector<8x1xf32>
      %c0_24 = arith.constant 0 : index
      %c0_25 = arith.constant 0 : index
      %44 = vector.load %arg5[%c0_24, %c0_25] : memref<8x1xf32, #tpu.memory_space<vmem>>, vector<8x1xf32>
      tpu.vector_store %arg5[%c0_24, %c0_25], %43 {strides = array<i32>} : memref<8x1xf32, #tpu.memory_space<vmem>>, vector<8x1xf32>,
    } else {
    }
    return
  }
  func.func @transform_0(%arg0: i32, %arg1: i32) -> (i32, i32) {
    %c0_i32 = arith.constant 0 : i32
    return %arg0, %arg1 : i32, i32
  }
  func.func @transform_1(%arg0: i32, %arg1: i32) -> (i32, i32) {
    %c0_i32 = arith.constant 0 : i32
    return %arg0, %arg1 : i32, i32
  }
  func.func @transform_2(%arg0: i32, %arg1: i32) -> (i32, i32) {
    %c0_i32 = arith.constant 0 : i32
    return %arg0, %arg1 : i32, i32
  }
  func.func @transform_3(%arg0: i32, %arg1: i32) -> (i32, i32) {
    %c0_i32 = arith.constant 0 : i32
    %c0_i32_0 = arith.constant 0 : i32
    return %arg0, %c0_i32 : i32, i32
  }
}

</mosaic_0001>

<llo_original>
// kernel: tpu_custom_call.1
$region0: #{tpu_custom_call.1}
  #allocation0 [shape = 'u32[]', space=smem, size = 0x4, offset = 0x4, fixed_abs, tag = 'smem constant byte address 0x4 - core index']
  #allocation1 [shape = 'u32[72,128]{1,0:T(1,128)}', space=vmem, size = 0x9000, scoped, tag = 'internal scratch']
  #allocation2 [shape = 'f32[8,1]{1,0:T(8,128)}', space=vmem, size = 0x1000, scoped, tag = 'scratch operand']
  #allocation3 [shape = 'f32[8,1]{1,0:T(8,128)}', space=vmem, size = 0x1000, scoped, tag = 'scratch operand']
  %s0 = inlined_call_operand.vmem [shape: f32[10,300], index: 0, kind: input, shape index: {}]
  %s1 = inlined_call_operand.hbm [shape: f32[10,300], index: 1, kind: input, shape index: {}]
  %s2 = inlined_call_operand.vmem [shape: s32[10,300], index: 2, kind: input, shape index: {}]
  %s3 = inlined_call_operand.vmem [shape: f32[10,1], index: 3, kind: output, shape index: {}]
  %s4 = sld [smem:[#allocation0]]
  $region57: #{tpu_custom_call.1} parent=0
    _
  %s6 = ssub.s32 1, %s4
  %s7 = scalar_select 0, %s6, %s4
  $region1: #{tpu_custom_call.1} parent=0
    #allocation4 [shape = 'u8[8192]{0}', space=vmem, size = 0x2000, scoped, tag = 'input window, operand 1']
    #allocation5 [shape = 's32[2]{0}', space=sflag, size = 0x8, scoped, tag = 'scoped memory for tpu_custom_call.1']
    %8 = vsyncpa [#allocation5], 0
    %s9 = scalar_lea.sflag [#allocation5], 1
    %10 = vsyncpa %s9, 0
    loop: start=0, step=1, limit=8
    $region2: #{tpu_custom_call.1} parent=1 // loop_pre_header
      _
    $region3: #{tpu_custom_call.1} parent=1 // loop_header
      %s12 = sphi 0, %s16
      %p13 = scmp.ge.s32.totalorder %s12, 8
      %s19 = sphi 0, %s31
      %s20 = sphi 0, %s27
      %s21 = sphi 0, %s19
      %s22 = sphi 0, %s20
      %s23 = sphi 0, %s21
      %s24 = sphi 0, %s22
      %s36 = sphi 0, %s38
      %s39 = sphi 0, %s36
      %s40 = sphi 0, %s39
      %s56 = sphi 0, %s40
      %s64 = sphi 0, %s66
      %s67 = sphi 0, %s64
      %s68 = sphi 0, %s67
      %s84 = sphi 0, %s68
      %s92 = sphi 0, %s94
      %s95 = sphi 0, %s92
      %s96 = sphi 0, %s95
      %s112 = sphi 0, %s96
      %s118 = sphi 0, %s120
      %s121 = sphi 0, %s118
      %s122 = sphi 0, %s121
      %s138 = sphi 0, %s122
    $region4: #{tpu_custom_call.1} parent=1 // loop_header_branch
      %15 = sbr.rel (%p13) target = $region8
    $region5: #{tpu_custom_call.1} parent=1 // loop_body
      %s17 = ssub.s32 %s12, 1
      %s18 = ssub.s32 %s12, 2
      %s25 = sadd.s32 1, %s20
      %p26 = scmp.ge.s32.totalorder %s25, 3
      %s27 = scalar_select %p26, 0, %s25
      %s28 = sadd.s32 1, %s19
      %s29 = scalar_select %p26, %s28, %s19
      %p30 = scmp.ge.s32.totalorder %s29, 2
      %s31 = scalar_select %p30, 0, %s29
      %s32 = ssub.s32 %s19, %s31
      %s33 = ssub.s32 %s20, %s27
      %s34 = sor.u32 %s32, %s33
      %p35 = scmp.eq.s32.totalorder %s34, 0
      %s37 = sadd.s32 %s36, 1
      %s38 = scalar_select %p35, %s36, %s37
      %p41 = pneg %p35
      %p42 = scmp.eq.s32.totalorder %s12, 5
      %p43 = por %p41, %p42
      %p44 = scmp.ne.s32.totalorder %s36, %s39
      %p45 = scmp.eq.s32.totalorder %s12, 0
      %p46 = por %p44, %p45
      %p47 = scmp.ne.s32.totalorder %s36, %s39
      %p48 = scmp.eq.s32.totalorder %s17, 5
      %p49 = por %p47, %p48
      %p50 = scmp.ne.s32.totalorder %s39, %s40
      %p51 = scmp.eq.s32.totalorder %s17, 0
      %p52 = por %p50, %p51
      %p53 = scmp.ne.s32.totalorder %s39, %s40
      %p54 = scmp.eq.s32.totalorder %s18, 5
      %p55 = por %p53, %p54
      %p57 = scmp.ne.s32.totalorder %s40, %s56
      %p58 = scmp.eq.s32.totalorder %s18, 0
      %p59 = por %p57, %p58
      %s60 = ssub.s32 %s19, %s31
      %s61 = ssub.s32 %s20, %s27
      %s62 = sor.u32 %s60, %s61
      %p63 = scmp.eq.s32.totalorder %s62, 0
      %s65 = sadd.s32 %s64, 1
      %s66 = scalar_select %p63, %s64, %s65
      %p69 = pneg %p63
      %p70 = scmp.eq.s32.totalorder %s12, 5
      %p71 = por %p69, %p70
      %p72 = scmp.ne.s32.totalorder %s64, %s67
      %p73 = scmp.eq.s32.totalorder %s12, 0
      %p74 = por %p72, %p73
      %p75 = scmp.ne.s32.totalorder %s64, %s67
      %p76 = scmp.eq.s32.totalorder %s17, 5
      %p77 = por %p75, %p76
      %p78 = scmp.ne.s32.totalorder %s67, %s68
      %p79 = scmp.eq.s32.totalorder %s17, 0
      %p80 = por %p78, %p79
      %p81 = scmp.ne.s32.totalorder %s67, %s68
      %p82 = scmp.eq.s32.totalorder %s18, 5
      %p83 = por %p81, %p82
      %p85 = scmp.ne.s32.totalorder %s68, %s84
      %p86 = scmp.eq.s32.totalorder %s18, 0
      %p87 = por %p85, %p86
      %s88 = ssub.s32 %s19, %s31
      %s89 = ssub.s32 %s20, %s27
      %s90 = sor.u32 %s88, %s89
      %p91 = scmp.eq.s32.totalorder %s90, 0
      %s93 = sadd.s32 %s92, 1
      %s94 = scalar_select %p91, %s92, %s93
      %p97 = pneg %p91
      %p98 = scmp.eq.s32.totalorder %s12, 5
      %p99 = por %p97, %p98
      %p100 = scmp.ne.s32.totalorder %s92, %s95
      %p101 = scmp.eq.s32.totalorder %s12, 0
      %p102 = por %p100, %p101
      %p103 = scmp.ne.s32.totalorder %s92, %s95
      %p104 = scmp.eq.s32.totalorder %s17, 5
      %p105 = por %p103, %p104
      %p106 = scmp.ne.s32.totalorder %s95, %s96
      %p107 = scmp.eq.s32.totalorder %s17, 0
      %p108 = por %p106, %p107
      %p109 = scmp.ne.s32.totalorder %s95, %s96
      %p110 = scmp.eq.s32.totalorder %s18, 5
      %p111 = por %p109, %p110
      %p113 = scmp.ne.s32.totalorder %s96, %s112
      %p114 = scmp.eq.s32.totalorder %s18, 0
      %p115 = por %p113, %p114
      %s116 = ssub.s32 %s19, %s31
      %p117 = scmp.eq.s32.totalorder %s116, 0
      %s119 = sadd.s32 %s118, 1
      %s120 = scalar_select %p117, %s118, %s119
      %p123 = pneg %p117
      %p124 = scmp.eq.s32.totalorder %s12, 5
      %p125 = por %p123, %p124
      %p126 = scmp.ne.s32.totalorder %s118, %s121
      %p127 = scmp.eq.s32.totalorder %s12, 0
      %p128 = por %p126, %p127
      %p129 = scmp.ne.s32.totalorder %s118, %s121
      %p130 = scmp.eq.s32.totalorder %s17, 5
      %p131 = por %p129, %p130
      %p132 = scmp.ne.s32.totalorder %s121, %s122
      %p133 = scmp.eq.s32.totalorder %s17, 0
      %p134 = por %p132, %p133
      %p135 = scmp.ne.s32.totalorder %s121, %s122
      %p136 = scmp.eq.s32.totalorder %s18, 5
      %p137 = por %p135, %p136
      %p139 = scmp.ne.s32.totalorder %s122, %s138
      %p140 = scmp.eq.s32.totalorder %s18, 0
      %p141 = por %p139, %p140
      %p142 = scmp.le.s32.totalorder 1, %s12
      %p143 = scmp.lt.s32.totalorder %s12, 7
      %p144 = pnand %p142, %p143
      %p145 = pneg %p144
      // Predicated region
      $region9: #{tpu_custom_call.1} parent=5 // pred_check
        _
      $region10: #{tpu_custom_call.1} parent=5 // pred_check_branch
        %147 = sbr.rel (%p144) target = $region12
      $region11: #{tpu_custom_call.1} parent=5 // pred_region
        %s148 = ssub.s32 %s12, 1
      $region12: #{tpu_custom_call.1} parent=5 // pred_fallthru
        _
      %p149 = scmp.lt.s32.totalorder %s12, 6
      // Predicated region
      $region13: #{tpu_custom_call.1} parent=5 // pred_check
        %p150 = pneg %p149
      $region14: #{tpu_custom_call.1} parent=5 // pred_check_branch
        %152 = sbr.rel (%p150) target = $region16
      $region15: #{tpu_custom_call.1} parent=5 // pred_region
        // Predicated region
        $region17: #{tpu_custom_call.1} parent=15 // pred_check
          %p153 = pneg %p46
        $region18: #{tpu_custom_call.1} parent=15 // pred_check_branch
          %155 = sbr.rel (%p153) target = $region20
        $region19: #{tpu_custom_call.1} parent=15 // pred_region
          %p156 = scmp.lt.s32.totalorder %s19, 1
          %s157 = scalar_select %p156, %s19, 1
          %p158 = scmp.lt.s32.totalorder %s20, 2
          %s159 = scalar_select %p158, %s20, 2
          %s160 = smul.addr %s157, 3
          %s161 = sadd.s32 %s159, %s160
          %s162 = smul.addr %s161, 8
          %s163 = scalar_lea.vmem %s0, %s162
        $region20: #{tpu_custom_call.1} parent=15 // pred_fallthru
          _
        // Predicated region
        $region21: #{tpu_custom_call.1} parent=15 // pred_check
          %p164 = pneg %p74
        $region22: #{tpu_custom_call.1} parent=15 // pred_check_branch
          %166 = sbr.rel (%p164) target = $region24
        $region23: #{tpu_custom_call.1} parent=15 // pred_region
          %s167 = sand.u32 %s64, 1
          %s168 = scalar_lea.sflag [#allocation5], %s167
          %s169 = sand.u32 %s64, 1
          %s170 = smul.addr %s169, 8
          %s171 = scalar_lea.vmem [#allocation4], %s170
          %173 = vsyncadd %s168, 0
          %s174 = smul.addr %s19, 3
          %s175 = sadd.s32 %s20, %s174
          %s176 = smul.addr %s175, 8
          %s177 = scalar_lea.hbm %s1, %s176
          %s179 = sshll.u32 %s177, 4
          %s180 = int_to_ptr.hbm [resolvable:$true] %s179
          %s181 = sshll.u32 %s171, 4
          %s182 = int_to_ptr.vmem [resolvable:$true] %s181
          %184 = dma.hbm_to_vmem [thread:$0]  %s180, 128, %s182, %s168
        $region24: #{tpu_custom_call.1} parent=15 // pred_fallthru
          _
        // Predicated region
        $region25: #{tpu_custom_call.1} parent=15 // pred_check
          %p185 = pneg %p102
        $region26: #{tpu_custom_call.1} parent=15 // pred_check_branch
          %187 = sbr.rel (%p185) target = $region28
        $region27: #{tpu_custom_call.1} parent=15 // pred_region
          %p188 = scmp.lt.s32.totalorder %s19, 1
          %s189 = scalar_select %p188, %s19, 1
          %p190 = scmp.lt.s32.totalorder %s20, 2
          %s191 = scalar_select %p190, %s20, 2
          %s192 = smul.addr %s189, 3
          %s193 = sadd.s32 %s191, %s192
          %s194 = smul.addr %s193, 8
          %s195 = scalar_lea.vmem %s2, %s194
        $region28: #{tpu_custom_call.1} parent=15 // pred_fallthru
          _
      $region16: #{tpu_custom_call.1} parent=5 // pred_fallthru
        _
      %p196 = scmp.le.s32.totalorder 1, %s12
      %p197 = scmp.lt.s32.totalorder %s12, 7
      %p198 = pnand %p196, %p197
      %p199 = pneg %p198
      // Predicated region
      $region29: #{tpu_custom_call.1} parent=5 // pred_check
        _
      $region30: #{tpu_custom_call.1} parent=5 // pred_check_branch
        %201 = sbr.rel (%p198) target = $region32
      $region31: #{tpu_custom_call.1} parent=5 // pred_region
        %s202 = ssub.s32 %s12, 1
        %s203 = sand.u32 %s67, 1
        %s204 = scalar_lea.sflag [#allocation5], %s203
        %s205 = sand.u32 %s67, 1
        %s206 = smul.addr %s205, 8
        %s207 = scalar_lea.vmem [#allocation4], %s206
        // Predicated region
        $region33: #{tpu_custom_call.1} parent=31 // pred_check
          %p208 = pneg %p80
        $region34: #{tpu_custom_call.1} parent=31 // pred_check_branch
          %210 = sbr.rel (%p208) target = $region36
        $region35: #{tpu_custom_call.1} parent=31 // pred_region
          %212 = dma.done %s204, 128
        $region36: #{tpu_custom_call.1} parent=31 // pred_fallthru
          _
        %p213 = scmp.lt.s32.totalorder %s21, 1
        %s214 = scalar_select %p213, %s21, 1
        %p215 = scmp.lt.s32.totalorder %s22, 2
        %s216 = scalar_select %p215, %s22, 2
        %s217 = smul.addr %s214, 3
        %s218 = sadd.s32 %s216, %s217
        %s219 = smul.addr %s218, 8
        %s220 = scalar_lea.vmem %s0, %s219
        %p221 = pneg %p52
        %p222 = pneg %p49
        %s223 = sand.u32 %s67, 1
        %s224 = scalar_lea.sflag [#allocation5], %s223
        %s225 = sand.u32 %s67, 1
        %s226 = smul.addr %s225, 8
        %s227 = scalar_lea.vmem [#allocation4], %s226
        %p228 = pneg %p80
        %p229 = pneg %p77
        %p230 = scmp.lt.s32.totalorder %s21, 1
        %s231 = scalar_select %p230, %s21, 1
        %p232 = scmp.lt.s32.totalorder %s22, 2
        %s233 = scalar_select %p232, %s22, 2
        %s234 = smul.addr %s231, 3
        %s235 = sadd.s32 %s233, %s234
        %s236 = smul.addr %s235, 8
        %s237 = scalar_lea.vmem %s2, %s236
        %p238 = pneg %p108
        %p239 = pneg %p105
        %p240 = pneg %p134
        %p241 = pneg %p131
        %p242 = scmp.lt.s32.totalorder %s21, 1
        %s243 = scalar_select %p242, %s21, 1
        %s244 = smul.addr %s243, 8
        %s245 = scalar_lea.vmem %s3, %s244
        %p246 = scmp.lt.s32.totalorder %s21, 1
        %s247 = scalar_select %p246, %s21, 1
        %p248 = scmp.lt.s32.totalorder %s22, 2
        %s249 = scalar_select %p248, %s22, 2
        %s250 = smul.addr %s247, 3
        %s251 = sadd.s32 %s249, %s250
        %s252 = smul.addr %s251, 8
        %s253 = scalar_lea.vmem %s0, %s252
        %p254 = scmp.lt.s32.totalorder %s21, 1
        %s255 = scalar_select %p254, %s21, 1
        %p256 = scmp.lt.s32.totalorder %s22, 2
        %s257 = scalar_select %p256, %s22, 2
        %s258 = smul.addr %s255, 3
        %s259 = sadd.s32 %s257, %s258
        %s260 = smul.addr %s259, 8
        %s261 = scalar_lea.vmem %s2, %s260
        %p262 = scmp.lt.s32.totalorder %s21, 1
        %s263 = scalar_select %p262, %s21, 1
        %s264 = smul.addr %s263, 8
        %s265 = scalar_lea.vmem %s3, %s264
        %p266 = scmp.eq.s32.totalorder %s22, 0
        // Predicated region
        $region37: #{tpu_custom_call.1} parent=31 // pred_check
          %p267 = pneg %p266
        $region38: #{tpu_custom_call.1} parent=31 // pred_check_branch
          %269 = sbr.rel (%p267) target = $region40
        $region39: #{tpu_custom_call.1} parent=31 // pred_region
          %vm270 = vcmask 7168
          %271 = vst.msk [vmem:[#allocation2] sm:$0xff] %vm270, 0.0
          %272 = vst.msk [vmem:[#allocation3] sm:$0xff] %vm270, 0.0
        $region40: #{tpu_custom_call.1} parent=31 // pred_fallthru
          _
        %v273 = vld [vmem:[%s253] sm:$0xff]
        %v274 = vld [vmem:[%s207] sm:$0xff]
        %v275 = vld [vmem:[%s261] sm:$0xff]
        %vm276 = vcmp.ne.s32.totalorder %v275, 0
        %v277 = vlaneseq
        %v278 = vand.u32 %v277, 127
        %s279 = smul.u32 %s22, 128
        %v280 = vstv %s279
        %v281 = vadd.s32 %v278, %v280
        %vm282 = vcmp.lt.s32.totalorder %v281, 300
        %vm283 = vmand %vm276, %vm282
        %v284 = vmax.f32 %v273, 0.0
        %v285 = vmul.f32 %v273, %v274
        %v286 = vsub.f32 %v284, %v285
        %v287 = vand.u32 2147483647, %v273
        %v288 = vsub.f32 0.0, %v287
        %v289 = vmul.f32 %v288, 1.442695
        %v290 = vpow.pop %v289
        %v291 = vadd.f32 %v290, 1.0
        %v292 = vlog2.pop %v291
        %v293 = vmul.f32 %v292, 0.6931472
        %v294 = vmul.f32 -0.5, %v290
        %v295 = vadd.f32 %v294, 1.0
        %v296 = vmul.f32 %v295, %v290
        %v297 = vand.u32 2147483647, %v290
        %vm298 = vcmp.lt.f32.partialorder %v297, 0.0004427343
        %v299 = vsel %vm298, %v296, %v293
        %v300 = vadd.f32 %v286, %v299
        %v301 = vld [vmem:[#allocation2] sm:$0xff]
        %v302 = vsel %vm283, %v300, 0.0
        %303 = vadd.xlane.f32.xlu0 %v302
        %v304 = vpop.xlane.xlu0 %303
        %v305 = vadd.f32 %v301, %v304
        %vm306 = vcmask 7168
        %307 = vst.msk [vmem:[#allocation2] sm:$0xff] %vm306, %v305
        %v308 = vld [vmem:[#allocation3] sm:$0xff]
        %v309 = vsel %vm283, 1, 0
        %v310 = vcvt.s32.f32 %v309
        %311 = vadd.xlane.f32.xlu0 %v310
        %v312 = vpop.xlane.xlu0 %311
        %v313 = vadd.f32 %v308, %v312
        %314 = vst.msk [vmem:[#allocation3] sm:$0xff] %vm306, %v313
        %p315 = scmp.eq.s32.totalorder %s22, 2
        // Predicated region
        $region41: #{tpu_custom_call.1} parent=31 // pred_check
          %p316 = pneg %p315
        $region42: #{tpu_custom_call.1} parent=31 // pred_check_branch
          %318 = sbr.rel (%p316) target = $region44
        $region43: #{tpu_custom_call.1} parent=31 // pred_region
          %v319 = vld [vmem:[#allocation2] sm:$0xff]
          %v320 = vld [vmem:[#allocation3] sm:$0xff]
          %v321 = vrcp.pop %v320
          %v322 = vmul.f32 %v320, %v321
          %v323 = vsub.f32 1.0, %v322
          %v324 = vmul.f32 %v321, %v323
          %v325 = vadd.f32 %v321, %v324
          %vm326 = vweird.f32 %v320
          %vm327 = vweird.f32 %v321
          %vm328 = vmor %vm326, %vm327
          %v329 = vsel %vm328, %v321, %v325
          %v330 = vand.u32 2147483647, %v320
          %vm331 = vcmp.eq.f32.partialorder %v330, 8.507059e+37
          %v332 = vand.u32 %v320, 2147483648
          %v333 = vor.u32 1.1754944e-38, %v332
          %v334 = vsel %vm331, %v333, %v329
          %v335 = vmul.f32 %v319, %v334
          %336 = vst.msk [vmem:[%s265] sm:$0xff] %vm306, %v335
        $region44: #{tpu_custom_call.1} parent=31 // pred_fallthru
          _
        %p337 = scmp.lt.s32.totalorder %s21, 1
        %s338 = scalar_select %p337, %s21, 1
        %s339 = smul.addr %s338, 8
        %s340 = scalar_lea.vmem %s3, %s339
        // Predicated region
        $region45: #{tpu_custom_call.1} parent=31 // pred_check
          %p341 = pneg %p131
        $region46: #{tpu_custom_call.1} parent=31 // pred_check_branch
          %343 = sbr.rel (%p341) target = $region48
        $region47: #{tpu_custom_call.1} parent=31 // pred_region
          _
        $region48: #{tpu_custom_call.1} parent=31 // pred_fallthru
          _
      $region32: #{tpu_custom_call.1} parent=5 // pred_fallthru
        _
      %p344 = scmp.le.s32.totalorder 2, %s12
      // Predicated region
      $region49: #{tpu_custom_call.1} parent=5 // pred_check
        %p345 = pneg %p344
      $region50: #{tpu_custom_call.1} parent=5 // pred_check_branch
        %347 = sbr.rel (%p345) target = $region52
      $region51: #{tpu_custom_call.1} parent=5 // pred_region
        %s348 = ssub.s32 %s12, 2
        // Predicated region
        $region53: #{tpu_custom_call.1} parent=51 // pred_check
          %p349 = pneg %p137
        $region54: #{tpu_custom_call.1} parent=51 // pred_check_branch
          %351 = sbr.rel (%p349) target = $region56
        $region55: #{tpu_custom_call.1} parent=51 // pred_region
          %p352 = scmp.lt.s32.totalorder %s23, 1
          %s353 = scalar_select %p352, %s23, 1
          %s354 = smul.addr %s353, 8
          %s355 = scalar_lea.vmem %s3, %s354
        $region56: #{tpu_custom_call.1} parent=51 // pred_fallthru
          _
      $region52: #{tpu_custom_call.1} parent=5 // pred_fallthru
        _
    $region6: #{tpu_custom_call.1} parent=1 // loop_footer
      %s16 = sadd.s32 1, %s12
    $region7: #{tpu_custom_call.1} parent=1 // loop_footer_branch
      %11 = sbr.rel target = $region3
    $region8: #{tpu_custom_call.1} parent=1 // loop_exit
      _
    %356 = vsyncpa [#allocation5], 1
    %s357 = scalar_lea.sflag [#allocation5], 1
    %358 = vsyncpa %s357, 1

</llo_original>
